<compile_context>
chip_gen: v7x
topology: tpu7x:2x2x1
jax: 0.10.0
libtpu: 0.0.40
codegen_flags: <defaults>
</compile_context>

<pallas_src>
import jax
import jax.numpy as jnp
from jax.experimental import pallas as pl
from jax.experimental.pallas import tpu as pltpu


# ----------------------------------------------------------------------------
# Kernel
# ----------------------------------------------------------------------------
def gnn_kernel(a_ref, x_ref, w1_ref, b1_ref, w2_ref, b2_ref, w3_ref, b3_ref,
               o_ref):
    cdt = a_ref.dtype                                   # matmul operand dtype
    a = a_ref[...]                                      # (NP, NP)

    # --- GCNConv 1: relu(A_hat @ (X W1) + b1) ---
    h = jnp.dot(x_ref[...], w1_ref[...], preferred_element_type=jnp.float32)
    h = jnp.dot(a, h.astype(cdt), preferred_element_type=jnp.float32)
    h = jnp.maximum(h + b1_ref[...], 0.0)               # f32 bias/relu (v5e-safe)

    # --- GCNConv 2: relu(A_hat @ (H W2) + b2) ---
    h = jnp.dot(h.astype(cdt), w2_ref[...], preferred_element_type=jnp.float32)
    h = jnp.dot(a, h.astype(cdt), preferred_element_type=jnp.float32)
    h = jnp.maximum(h + b2_ref[...], 0.0)

    # --- Linear head (lane-dense padded output, sliced in the wrapper) ---
    o_ref[...] = (jnp.dot(h.astype(cdt), w3_ref[...],
                          preferred_element_type=jnp.float32) + b3_ref[...])


# ----------------------------------------------------------------------------
# Glue: normalized adjacency (scatter-free), padding helpers, wrappers
# ----------------------------------------------------------------------------
def _round_up(x, m):
    return ((x + m - 1) // m) * m


def build_norm_adj(edge_index, edge_weight, num_nodes):
    """Dense A_hat = D^-1/2 (A + I) D^-1/2 (PyG gcn_norm defaults), scatter-free."""
    row, col = edge_index[0], edge_index[1]              # row = source, col = target
    num_edges = row.shape[0]
    if edge_weight is None:
        edge_weight = jnp.ones((num_edges,), jnp.float32)
    loop = jnp.arange(num_nodes, dtype=row.dtype)
    row = jnp.concatenate([row, loop])
    col = jnp.concatenate([col, loop])
    ew = jnp.concatenate([edge_weight.astype(jnp.float32),
                          jnp.ones((num_nodes,), jnp.float32)])

    src_oh = jax.nn.one_hot(row, num_nodes, dtype=jnp.float32)   # (E+N, N)
    dst_oh = jax.nn.one_hot(col, num_nodes, dtype=jnp.float32)   # (E+N, N)

    deg = ew @ dst_oh                                            # deg[t] = sum in-weights
    dinv = jnp.where(deg > 0, jax.lax.rsqrt(deg), 0.0)
    norm = (src_oh @ dinv) * ew * (dst_oh @ dinv)                # per-edge coeff
    # A_hat[target, source] = sum_e norm[e]  for matching (target, source)
    a_hat = dst_oh.T @ (norm[:, None] * src_oh)                  # (N, N)
    return a_hat


def player_movement_gnn_batched(x_b, a_hat_b, params, *,
                                compute_dtype=jnp.float32):
    """x_b: (B, N, Cin), a_hat_b: (B, N, N)  ->  (B, N, out_channels)."""
    w1, b1, w2, b2, w3, b3 = params
    B, N, Cin = x_b.shape
    H = w1.shape[1]
    out_dim = w3.shape[1]

    # Pad everything to lane-dense 128-multiples (zeros -> exact semantics).
    NP = _round_up(N, 128)
    CP = _round_up(Cin, 128)
    HP = _round_up(H, 128)
    OP = _round_up(out_dim, 128)

    a_p = jnp.pad(a_hat_b, ((0, 0), (0, NP - N), (0, NP - N))).astype(compute_dtype)
    x_p = jnp.pad(x_b, ((0, 0), (0, NP - N), (0, CP - Cin))).astype(compute_dtype)
    w1_p = jnp.pad(w1, ((0, CP - Cin), (0, HP - H))).astype(compute_dtype)
    w2_p = jnp.pad(w2, ((0, HP - H), (0, HP - H))).astype(compute_dtype)
    w3_p = jnp.pad(w3, ((0, HP - H), (0, OP - out_dim))).astype(compute_dtype)
    b1_p = jnp.pad(b1, ((0, 0), (0, HP - H))).astype(jnp.float32)
    b2_p = jnp.pad(b2, ((0, 0), (0, HP - H))).astype(jnp.float32)
    b3_p = jnp.pad(b3, ((0, 0), (0, OP - out_dim))).astype(jnp.float32)

    itemsize = jnp.dtype(compute_dtype).itemsize
    flops = 2 * B * NP * (CP * HP + 2 * NP * HP + HP * HP + HP * OP)
    bytes_accessed = (
        (B * NP * NP + B * NP * CP + CP * HP + HP * HP + HP * OP) * itemsize
        + (2 * HP + OP) * 4 + B * NP * OP * 4)

    out_padded = pl.pallas_call(
        gnn_kernel,
        out_shape=jax.ShapeDtypeStruct((B, NP, OP), jnp.float32),
        grid=(B,),
        in_specs=[
            pl.BlockSpec((None, NP, NP), lambda b: (b, 0, 0)),   # A_hat (per graph)
            pl.BlockSpec((None, NP, CP), lambda b: (b, 0, 0)),   # X     (per graph)
            pl.BlockSpec((CP, HP), lambda b: (0, 0)),            # W1 (broadcast)
            pl.BlockSpec((1, HP), lambda b: (0, 0)),             # b1
            pl.BlockSpec((HP, HP), lambda b: (0, 0)),            # W2
            pl.BlockSpec((1, HP), lambda b: (0, 0)),             # b2
            pl.BlockSpec((HP, OP), lambda b: (0, 0)),            # W3
            pl.BlockSpec((1, OP), lambda b: (0, 0)),             # b3
        ],
        out_specs=pl.BlockSpec((None, NP, OP), lambda b: (b, 0, 0)),
        compiler_params=pltpu.CompilerParams(
            dimension_semantics=("parallel",)),
        cost_estimate=pl.CostEstimate(flops=flops, transcendentals=0,
                                      bytes_accessed=bytes_accessed),
    )(a_p, x_p, w1_p, b1_p, w2_p, b2_p, w3_p, b3_p)

    return out_padded[:, :N, :out_dim]


def player_movement_gnn(x, edge_index, params, edge_weight=None, *,
                        compute_dtype=jnp.float32):
    """Single-graph convenience wrapper (B=1)."""
    a_hat = build_norm_adj(edge_index, edge_weight, x.shape[0])
    out = player_movement_gnn_batched(x[None], a_hat[None], params,
                                      compute_dtype=compute_dtype)
    return out[0]


# TODO(synk): for N beyond a few thousand nodes, A_hat no longer fits a single
# whole-array VMEM block (v7x: 64 MiB VMEM) and needs a row-tiled grid over
# A_hat with a K-accumulation axis; not needed at tracking-scene sizes.


def init_params(key, in_channels=5, hidden_channels=64, out_channels=2):
    ks = jax.random.split(key, 6)
    # GCNConv weights stored pre-transposed: (in, out) so kernel does x @ W.
    w1 = jax.random.normal(ks[0], (in_channels, hidden_channels), jnp.float32) * 0.1
    b1 = jnp.zeros((1, hidden_channels), jnp.float32)
    w2 = jax.random.normal(ks[1], (hidden_channels, hidden_channels), jnp.float32) * 0.1
    b2 = jnp.zeros((1, hidden_channels), jnp.float32)
    w3 = jax.random.normal(ks[2], (hidden_channels, out_channels), jnp.float32) * 0.1
    b3 = jax.random.normal(ks[3], (1, out_channels), jnp.float32) * 0.1
    return (w1, b1, w2, b2, w3, b3)


def reference_forward(x, a_hat, params):
    """Pure-JAX reference for correctness checking."""
    w1, b1, w2, b2, w3, b3 = params
    h = jnp.maximum(a_hat @ (x @ w1) + b1, 0.0)
    h = jnp.maximum(a_hat @ (h @ w2) + b2, 0.0)
    return h @ w3 + b3


# ----------------------------------------------------------------------------
# Demo / correctness check
# ----------------------------------------------------------------------------
if __name__ == "__main__":
    key = jax.random.PRNGKey(0)
    k_feat, k_edge, k_w, k_param = jax.random.split(key, 4)

    batch = 4             # frames / graphs per call
    num_nodes = 16        # players / tracked detections per frame
    in_channels = 5       # (x, y, vx, vy, team) style features
    num_edges = 32

    x_b = jax.random.normal(k_feat, (batch, num_nodes, in_channels), jnp.float32)
    edge_index_b = jax.random.randint(k_edge, (batch, 2, num_edges), 0,
                                      num_nodes, dtype=jnp.int32)
    edge_weight_b = jax.random.uniform(k_w, (batch, num_edges), jnp.float32,
                                       minval=0.1, maxval=1.0)

    params = init_params(k_param, in_channels=in_channels,
                         hidden_channels=64, out_channels=2)

    # Scatter-free normalized adjacency, vmapped over the batch.
    a_hat_b = jax.vmap(
        lambda ei, ew: build_norm_adj(ei, ew, num_nodes))(edge_index_b,
                                                          edge_weight_b)

    fwd_f32 = jax.jit(lambda xb, ab: player_movement_gnn_batched(xb, ab, params))
    fwd_bf16 = jax.jit(lambda xb, ab: player_movement_gnn_batched(
        xb, ab, params, compute_dtype=jnp.bfloat16))

    out = jax.block_until_ready(fwd_f32(x_b, a_hat_b))
    ref = jax.vmap(lambda xx, aa: reference_forward(xx, aa, params))(x_b, a_hat_b)

    assert out.shape == (batch, num_nodes, 2)
    assert jnp.allclose(out, ref, atol=1e-4, rtol=1e-4)

    # bf16 MXU path (v6e / v7x fast path): f32 accumulation, looser tolerance.
    out_bf16 = jax.block_until_ready(fwd_bf16(x_b, a_hat_b))
    assert jnp.allclose(out_bf16, ref, atol=5e-2, rtol=5e-2)

    # Single-graph API parity check.
    out0 = jax.block_until_ready(
        player_movement_gnn(x_b[0], edge_index_b[0], params,
                            edge_weight=edge_weight_b[0]))
    assert jnp.allclose(out0, ref[0], atol=1e-4, rtol=1e-4)

    print("KERNEL_OK")
</pallas_src>

<mosaic_0001>
module attributes {stable_mosaic.version = 11 : i64} {
  func.func @gnn_kernel(%arg0: i32, %arg1: memref<1x128x128xf32, #tpu.memory_space<vmem>>, %arg2: memref<1x128x128xf32, #tpu.memory_space<vmem>>, %arg3: memref<128x128xf32, #tpu.memory_space<vmem>>, %arg4: memref<1x128xf32, #tpu.memory_space<vmem>>, %arg5: memref<128x128xf32, #tpu.memory_space<vmem>>, %arg6: memref<1x128xf32, #tpu.memory_space<vmem>>, %arg7: memref<128x128xf32, #tpu.memory_space<vmem>>, %arg8: memref<1x128xf32, #tpu.memory_space<vmem>>, %arg9: memref<1x128x128xf32, #tpu.memory_space<vmem>>) attributes {dimension_semantics = [#tpu.dimension_semantics<parallel>], iteration_bounds = array<i64: 4>, scalar_prefetch = 0 : i64, scratch_operands = 0 : i64, tpu.core_type = #tpu.core_type<tc>, window_params = [{transform_indices = @transform_0, window_bounds = array<i64: 1, 128, 128>}, {transform_indices = @transform_1, window_bounds = array<i64: 1, 128, 128>}, {pipeline_mode = #tpu.pipeline_mode<synchronous>, transform_indices = @transform_2, window_bounds = array<i64: 128, 128>}, {pipeline_mode = #tpu.pipeline_mode<synchronous>, transform_indices = @transform_3, window_bounds = array<i64: 1, 128>}, {pipeline_mode = #tpu.pipeline_mode<synchronous>, transform_indices = @transform_4, window_bounds = array<i64: 128, 128>}, {pipeline_mode = #tpu.pipeline_mode<synchronous>, transform_indices = @transform_5, window_bounds = array<i64: 1, 128>}, {pipeline_mode = #tpu.pipeline_mode<synchronous>, transform_indices = @transform_6, window_bounds = array<i64: 128, 128>}, {pipeline_mode = #tpu.pipeline_mode<synchronous>, transform_indices = @transform_7, window_bounds = array<i64: 1, 128>}, {transform_indices = @transform_8, window_bounds = array<i64: 1, 128, 128>}]} {
    %c0 = arith.constant 0 : index
    %c0_0 = arith.constant 0 : index
    %c0_1 = arith.constant 0 : index
    %0 = vector.load %arg1[%c0, %c0_0, %c0_1] : memref<1x128x128xf32, #tpu.memory_space<vmem>>, vector<1x128x128xf32>
    %1 = vector.shape_cast %0 : vector<1x128x128xf32> to vector<128x128xf32>
    %c0_2 = arith.constant 0 : index
    %c0_3 = arith.constant 0 : index
    %c0_4 = arith.constant 0 : index
    %2 = vector.load %arg2[%c0_2, %c0_3, %c0_4] : memref<1x128x128xf32, #tpu.memory_space<vmem>>, vector<1x128x128xf32>
    %3 = vector.shape_cast %2 : vector<1x128x128xf32> to vector<128x128xf32>
    %c0_5 = arith.constant 0 : index
    %c0_6 = arith.constant 0 : index
    %4 = vector.load %arg3[%c0_5, %c0_6] : memref<128x128xf32, #tpu.memory_space<vmem>>, vector<128x128xf32>
    %cst = arith.constant dense<0.000000e+00> : vector<128x128xf32>
    %5 = tpu.matmul %3, %4, %cst {dimension_numbers = #tpu.dot_dimension_numbers<[1], [0], [0], [1], [0, 0, 1, 1], [], []>} : vector<128x128xf32>, vector<128x128xf32>, vector<128x128xf32> -> vector<128x128xf32>
    %cst_7 = arith.constant dense<0.000000e+00> : vector<128x128xf32>
    %6 = tpu.matmul %1, %5, %cst_7 {dimension_numbers = #tpu.dot_dimension_numbers<[1], [0], [0], [1], [0, 0, 1, 1], [], []>} : vector<128x128xf32>, vector<128x128xf32>, vector<128x128xf32> -> vector<128x128xf32>
    %c0_8 = arith.constant 0 : index
    %c0_9 = arith.constant 0 : index
    %7 = vector.load %arg4[%c0_8, %c0_9] : memref<1x128xf32, #tpu.memory_space<vmem>>, vector<1x128xf32>
    %8 = vector.broadcast %7 : vector<1x128xf32> to vector<128x128xf32>
    %9 = arith.addf %6, %8 : vector<128x128xf32>
    %cst_10 = arith.constant 0.000000e+00 : f32
    %10 = vector.broadcast %cst_10 : f32 to vector<128x128xf32>
    %11 = arith.maximumf %9, %10 : vector<128x128xf32>
    %c0_11 = arith.constant 0 : index
    %c0_12 = arith.constant 0 : index
    %12 = vector.load %arg5[%c0_11, %c0_12] : memref<128x128xf32, #tpu.memory_space<vmem>>, vector<128x128xf32>
    %cst_13 = arith.constant dense<0.000000e+00> : vector<128x128xf32>
    %13 = tpu.matmul %11, %12, %cst_13 {dimension_numbers = #tpu.dot_dimension_numbers<[1], [0], [0], [1], [0, 0, 1, 1], [], []>} : vector<128x128xf32>, vector<128x128xf32>, vector<128x128xf32> -> vector<128x128xf32>
    %cst_14 = arith.constant dense<0.000000e+00> : vector<128x128xf32>
    %14 = tpu.matmul %1, %13, %cst_14 {dimension_numbers = #tpu.dot_dimension_numbers<[1], [0], [0], [1], [0, 0, 1, 1], [], []>} : vector<128x128xf32>, vector<128x128xf32>, vector<128x128xf32> -> vector<128x128xf32>
    %c0_15 = arith.constant 0 : index
    %c0_16 = arith.constant 0 : index
    %15 = vector.load %arg6[%c0_15, %c0_16] : memref<1x128xf32, #tpu.memory_space<vmem>>, vector<1x128xf32>
    %16 = vector.broadcast %15 : vector<1x128xf32> to vector<128x128xf32>
    %17 = arith.addf %14, %16 : vector<128x128xf32>
    %cst_17 = arith.constant 0.000000e+00 : f32
    %18 = vector.broadcast %cst_17 : f32 to vector<128x128xf32>
    %19 = arith.maximumf %17, %18 : vector<128x128xf32>
    %c0_18 = arith.constant 0 : index
    %c0_19 = arith.constant 0 : index
    %20 = vector.load %arg7[%c0_18, %c0_19] : memref<128x128xf32, #tpu.memory_space<vmem>>, vector<128x128xf32>
    %cst_20 = arith.constant dense<0.000000e+00> : vector<128x128xf32>
    %21 = tpu.matmul %19, %20, %cst_20 {dimension_numbers = #tpu.dot_dimension_numbers<[1], [0], [0], [1], [0, 0, 1, 1], [], []>} : vector<128x128xf32>, vector<128x128xf32>, vector<128x128xf32> -> vector<128x128xf32>
    %c0_21 = arith.constant 0 : index
    %c0_22 = arith.constant 0 : index
    %22 = vector.load %arg8[%c0_21, %c0_22] : memref<1x128xf32, #tpu.memory_space<vmem>>, vector<1x128xf32>
    %23 = vector.broadcast %22 : vector<1x128xf32> to vector<128x128xf32>
    %24 = arith.addf %21, %23 : vector<128x128xf32>
    %c0_23 = arith.constant 0 : index
    %c0_24 = arith.constant 0 : index
    %c0_25 = arith.constant 0 : index
    %25 = vector.load %arg9[%c0_23, %c0_24, %c0_25] : memref<1x128x128xf32, #tpu.memory_space<vmem>>, vector<1x128x128xf32>
    %26 = vector.shape_cast %25 : vector<1x128x128xf32> to vector<128x128xf32>
    %27 = vector.shape_cast %24 : vector<128x128xf32> to vector<1x128x128xf32>
    tpu.vector_store %arg9[%c0_23, %c0_24, %c0_25], %27 {strides = array<i32>} : memref<1x128x128xf32, #tpu.memory_space<vmem>>, vector<1x128x128xf32>,
    return
  }
  func.func @transform_0(%arg0: i32) -> (i32, i32, i32) {
    %c0_i32 = arith.constant 0 : i32
    %c0_i32_0 = arith.constant 0 : i32
    %c0_i32_1 = arith.constant 0 : i32
    return %arg0, %c0_i32, %c0_i32_0 : i32, i32, i32
  }
  func.func @transform_1(%arg0: i32) -> (i32, i32, i32) {
    %c0_i32 = arith.constant 0 : i32
    %c0_i32_0 = arith.constant 0 : i32
    %c0_i32_1 = arith.constant 0 : i32
    return %arg0, %c0_i32, %c0_i32_0 : i32, i32, i32
  }
  func.func @transform_2(%arg0: i32) -> (i32, i32) {
    %c0_i32 = arith.constant 0 : i32
    %c0_i32_0 = arith.constant 0 : i32
    %c0_i32_1 = arith.constant 0 : i32
    return %c0_i32, %c0_i32_0 : i32, i32
  }
  func.func @transform_3(%arg0: i32) -> (i32, i32) {
    %c0_i32 = arith.constant 0 : i32
    %c0_i32_0 = arith.constant 0 : i32
    %c0_i32_1 = arith.constant 0 : i32
    return %c0_i32, %c0_i32_0 : i32, i32
  }
  func.func @transform_4(%arg0: i32) -> (i32, i32) {
    %c0_i32 = arith.constant 0 : i32
    %c0_i32_0 = arith.constant 0 : i32
    %c0_i32_1 = arith.constant 0 : i32
    return %c0_i32, %c0_i32_0 : i32, i32
  }
  func.func @transform_5(%arg0: i32) -> (i32, i32) {
    %c0_i32 = arith.constant 0 : i32
    %c0_i32_0 = arith.constant 0 : i32
    %c0_i32_1 = arith.constant 0 : i32
    return %c0_i32, %c0_i32_0 : i32, i32
  }
  func.func @transform_6(%arg0: i32) -> (i32, i32) {
    %c0_i32 = arith.constant 0 : i32
    %c0_i32_0 = arith.constant 0 : i32
    %c0_i32_1 = arith.constant 0 : i32
    return %c0_i32, %c0_i32_0 : i32, i32
  }
  func.func @transform_7(%arg0: i32) -> (i32, i32) {
    %c0_i32 = arith.constant 0 : i32
    %c0_i32_0 = arith.constant 0 : i32
    %c0_i32_1 = arith.constant 0 : i32
    return %c0_i32, %c0_i32_0 : i32, i32
  }
  func.func @transform_8(%arg0: i32) -> (i32, i32, i32) {
    %c0_i32 = arith.constant 0 : i32
    %c0_i32_0 = arith.constant 0 : i32
    %c0_i32_1 = arith.constant 0 : i32
    return %arg0, %c0_i32, %c0_i32_0 : i32, i32, i32
  }
}

</mosaic_0001>

<llo_original>
// kernel: _lambda_.1
$region0: #{_lambda_.1}
  #allocation0 [shape = 'u32[]', space=smem, size = 0x4, offset = 0x4, fixed_abs, tag = 'smem constant byte address 0x4 - core index']
  #allocation1 [shape = 'u32[144,128]{1,0:T(1,128)}', space=vmem, size = 0x12000, scoped, tag = 'internal scratch']
  %s0 = inlined_call_operand.vmem [shape: f32[4,128,128], index: 0, kind: input, shape index: {}]
  %s1 = inlined_call_operand.vmem [shape: f32[4,128,128], index: 1, kind: input, shape index: {}]
  %s2 = inlined_call_operand.vmem [shape: f32[128,128], index: 2, kind: input, shape index: {}]
  %s3 = inlined_call_operand.vmem [shape: f32[1,128], index: 3, kind: input, shape index: {}, may-alias: {3,5}]
  %s4 = inlined_call_operand.vmem [shape: f32[128,128], index: 4, kind: input, shape index: {}]
  %s5 = inlined_call_operand.vmem [shape: f32[1,128], index: 5, kind: input, shape index: {}, may-alias: {3,5}]
  %s6 = inlined_call_operand.vmem [shape: f32[128,128], index: 6, kind: input, shape index: {}]
  %s7 = inlined_call_operand.vmem [shape: f32[1,128], index: 7, kind: input, shape index: {}]
  %s8 = inlined_call_operand.vmem [shape: f32[4,128,128], index: 8, kind: output, shape index: {}]
  %s9 = sld [smem:[#allocation0]]
  $region65: #{_lambda_.1} parent=0
    _
  %s11 = ssub.s32 1, %s9
  %s12 = scalar_select 0, %s11, %s9
  loop: start=0, step=1, limit=6
  $region2: #{_lambda_.1} parent=0 // loop_pre_header
    _
  $region3: #{_lambda_.1} parent=0 // loop_header
    %s14 = sphi 0, %s18
    %p15 = scmp.ge.s32.totalorder %s14, 6
    %s24 = sphi 0, %s26
    %s27 = sphi 0, %s24
    %s28 = sphi 0, %s27
    %s44 = sphi 0, %s28
    %s50 = sphi 0, %s52
    %s53 = sphi 0, %s50
    %s54 = sphi 0, %s53
    %s70 = sphi 0, %s54
    %s74 = sphi 0, %s74
    %s76 = sphi 0, %s74
    %s77 = sphi 0, %s76
    %s91 = sphi 0, %s77
    %s95 = sphi 0, %s95
    %s97 = sphi 0, %s95
    %s98 = sphi 0, %s97
    %s112 = sphi 0, %s98
    %s116 = sphi 0, %s116
    %s118 = sphi 0, %s116
    %s119 = sphi 0, %s118
    %s133 = sphi 0, %s119
    %s137 = sphi 0, %s137
    %s139 = sphi 0, %s137
    %s140 = sphi 0, %s139
    %s154 = sphi 0, %s140
    %s158 = sphi 0, %s158
    %s160 = sphi 0, %s158
    %s161 = sphi 0, %s160
    %s175 = sphi 0, %s161
    %s179 = sphi 0, %s179
    %s181 = sphi 0, %s179
    %s182 = sphi 0, %s181
    %s196 = sphi 0, %s182
    %s202 = sphi 0, %s204
    %s205 = sphi 0, %s202
    %s206 = sphi 0, %s205
    %s222 = sphi 0, %s206
  $region4: #{_lambda_.1} parent=0 // loop_header_branch
    %17 = sbr.rel (%p15) target = $region8
  $region5: #{_lambda_.1} parent=0 // loop_body
    %s19 = ssub.s32 %s14, 1
    %s20 = ssub.s32 %s14, 2
    %s21 = sadd.s32 %s14, 1
    %s22 = ssub.s32 %s14, %s21
    %p23 = scmp.eq.s32.totalorder %s22, 0
    %s25 = sadd.s32 %s24, 1
    %s26 = scalar_select %p23, %s24, %s25
    %p29 = pneg %p23
    %p30 = scmp.eq.s32.totalorder %s14, 3
    %p31 = por %p29, %p30
    %p32 = scmp.ne.s32.totalorder %s24, %s27
    %p33 = scmp.eq.s32.totalorder %s14, 0
    %p34 = por %p32, %p33
    %p35 = scmp.ne.s32.totalorder %s24, %s27
    %p36 = scmp.eq.s32.totalorder %s19, 3
    %p37 = por %p35, %p36
    %p38 = scmp.ne.s32.totalorder %s27, %s28
    %p39 = scmp.eq.s32.totalorder %s19, 0
    %p40 = por %p38, %p39
    %p41 = scmp.ne.s32.totalorder %s27, %s28
    %p42 = scmp.eq.s32.totalorder %s20, 3
    %p43 = por %p41, %p42
    %p45 = scmp.ne.s32.totalorder %s28, %s44
    %p46 = scmp.eq.s32.totalorder %s20, 0
    %p47 = por %p45, %p46
    %s48 = ssub.s32 %s14, %s21
    %p49 = scmp.eq.s32.totalorder %s48, 0
    %s51 = sadd.s32 %s50, 1
    %s52 = scalar_select %p49, %s50, %s51
    %p55 = pneg %p49
    %p56 = scmp.eq.s32.totalorder %s14, 3
    %p57 = por %p55, %p56
    %p58 = scmp.ne.s32.totalorder %s50, %s53
    %p59 = scmp.eq.s32.totalorder %s14, 0
    %p60 = por %p58, %p59
    %p61 = scmp.ne.s32.totalorder %s50, %s53
    %p62 = scmp.eq.s32.totalorder %s19, 3
    %p63 = por %p61, %p62
    %p64 = scmp.ne.s32.totalorder %s53, %s54
    %p65 = scmp.eq.s32.totalorder %s19, 0
    %p66 = por %p64, %p65
    %p67 = scmp.ne.s32.totalorder %s53, %s54
    %p68 = scmp.eq.s32.totalorder %s20, 3
    %p69 = por %p67, %p68
    %p71 = scmp.ne.s32.totalorder %s54, %s70
    %p72 = scmp.eq.s32.totalorder %s20, 0
    %p73 = por %p71, %p72
    %s75 = sadd.s32 %s74, 1
    %p78 = scmp.eq.s32.totalorder %s14, 3
    %p79 = scmp.ne.s32.totalorder %s74, %s76
    %p80 = scmp.eq.s32.totalorder %s14, 0
    %p81 = por %p79, %p80
    %p82 = scmp.ne.s32.totalorder %s74, %s76
    %p83 = scmp.eq.s32.totalorder %s19, 3
    %p84 = por %p82, %p83
    %p85 = scmp.ne.s32.totalorder %s76, %s77
    %p86 = scmp.eq.s32.totalorder %s19, 0
    %p87 = por %p85, %p86
    %p88 = scmp.ne.s32.totalorder %s76, %s77
    %p89 = scmp.eq.s32.totalorder %s20, 3
    %p90 = por %p88, %p89
    %p92 = scmp.ne.s32.totalorder %s77, %s91
    %p93 = scmp.eq.s32.totalorder %s20, 0
    %p94 = por %p92, %p93
    %s96 = sadd.s32 %s95, 1
    %p99 = scmp.eq.s32.totalorder %s14, 3
    %p100 = scmp.ne.s32.totalorder %s95, %s97
    %p101 = scmp.eq.s32.totalorder %s14, 0
    %p102 = por %p100, %p101
    %p103 = scmp.ne.s32.totalorder %s95, %s97
    %p104 = scmp.eq.s32.totalorder %s19, 3
    %p105 = por %p103, %p104
    %p106 = scmp.ne.s32.totalorder %s97, %s98
    %p107 = scmp.eq.s32.totalorder %s19, 0
    %p108 = por %p106, %p107
    %p109 = scmp.ne.s32.totalorder %s97, %s98
    %p110 = scmp.eq.s32.totalorder %s20, 3
    %p111 = por %p109, %p110
    %p113 = scmp.ne.s32.totalorder %s98, %s112
    %p114 = scmp.eq.s32.totalorder %s20, 0
    %p115 = por %p113, %p114
    %s117 = sadd.s32 %s116, 1
    %p120 = scmp.eq.s32.totalorder %s14, 3
    %p121 = scmp.ne.s32.totalorder %s116, %s118
    %p122 = scmp.eq.s32.totalorder %s14, 0
    %p123 = por %p121, %p122
    %p124 = scmp.ne.s32.totalorder %s116, %s118
    %p125 = scmp.eq.s32.totalorder %s19, 3
    %p126 = por %p124, %p125
    %p127 = scmp.ne.s32.totalorder %s118, %s119
    %p128 = scmp.eq.s32.totalorder %s19, 0
    %p129 = por %p127, %p128
    %p130 = scmp.ne.s32.totalorder %s118, %s119
    %p131 = scmp.eq.s32.totalorder %s20, 3
    %p132 = por %p130, %p131
    %p134 = scmp.ne.s32.totalorder %s119, %s133
    %p135 = scmp.eq.s32.totalorder %s20, 0
    %p136 = por %p134, %p135
    %s138 = sadd.s32 %s137, 1
    %p141 = scmp.eq.s32.totalorder %s14, 3
    %p142 = scmp.ne.s32.totalorder %s137, %s139
    %p143 = scmp.eq.s32.totalorder %s14, 0
    %p144 = por %p142, %p143
    %p145 = scmp.ne.s32.totalorder %s137, %s139
    %p146 = scmp.eq.s32.totalorder %s19, 3
    %p147 = por %p145, %p146
    %p148 = scmp.ne.s32.totalorder %s139, %s140
    %p149 = scmp.eq.s32.totalorder %s19, 0
    %p150 = por %p148, %p149
    %p151 = scmp.ne.s32.totalorder %s139, %s140
    %p152 = scmp.eq.s32.totalorder %s20, 3
    %p153 = por %p151, %p152
    %p155 = scmp.ne.s32.totalorder %s140, %s154
    %p156 = scmp.eq.s32.totalorder %s20, 0
    %p157 = por %p155, %p156
    %s159 = sadd.s32 %s158, 1
    %p162 = scmp.eq.s32.totalorder %s14, 3
    %p163 = scmp.ne.s32.totalorder %s158, %s160
    %p164 = scmp.eq.s32.totalorder %s14, 0
    %p165 = por %p163, %p164
    %p166 = scmp.ne.s32.totalorder %s158, %s160
    %p167 = scmp.eq.s32.totalorder %s19, 3
    %p168 = por %p166, %p167
    %p169 = scmp.ne.s32.totalorder %s160, %s161
    %p170 = scmp.eq.s32.totalorder %s19, 0
    %p171 = por %p169, %p170
    %p172 = scmp.ne.s32.totalorder %s160, %s161
    %p173 = scmp.eq.s32.totalorder %s20, 3
    %p174 = por %p172, %p173
    %p176 = scmp.ne.s32.totalorder %s161, %s175
    %p177 = scmp.eq.s32.totalorder %s20, 0
    %p178 = por %p176, %p177
    %s180 = sadd.s32 %s179, 1
    %p183 = scmp.eq.s32.totalorder %s14, 3
    %p184 = scmp.ne.s32.totalorder %s179, %s181
    %p185 = scmp.eq.s32.totalorder %s14, 0
    %p186 = por %p184, %p185
    %p187 = scmp.ne.s32.totalorder %s179, %s181
    %p188 = scmp.eq.s32.totalorder %s19, 3
    %p189 = por %p187, %p188
    %p190 = scmp.ne.s32.totalorder %s181, %s182
    %p191 = scmp.eq.s32.totalorder %s19, 0
    %p192 = por %p190, %p191
    %p193 = scmp.ne.s32.totalorder %s181, %s182
    %p194 = scmp.eq.s32.totalorder %s20, 3
    %p195 = por %p193, %p194
    %p197 = scmp.ne.s32.totalorder %s182, %s196
    %p198 = scmp.eq.s32.totalorder %s20, 0
    %p199 = por %p197, %p198
    %s200 = ssub.s32 %s14, %s21
    %p201 = scmp.eq.s32.totalorder %s200, 0
    %s203 = sadd.s32 %s202, 1
    %s204 = scalar_select %p201, %s202, %s203
    %p207 = pneg %p201
    %p208 = scmp.eq.s32.totalorder %s14, 3
    %p209 = por %p207, %p208
    %p210 = scmp.ne.s32.totalorder %s202, %s205
    %p211 = scmp.eq.s32.totalorder %s14, 0
    %p212 = por %p210, %p211
    %p213 = scmp.ne.s32.totalorder %s202, %s205
    %p214 = scmp.eq.s32.totalorder %s19, 3
    %p215 = por %p213, %p214
    %p216 = scmp.ne.s32.totalorder %s205, %s206
    %p217 = scmp.eq.s32.totalorder %s19, 0
    %p218 = por %p216, %p217
    %p219 = scmp.ne.s32.totalorder %s205, %s206
    %p220 = scmp.eq.s32.totalorder %s20, 3
    %p221 = por %p219, %p220
    %p223 = scmp.ne.s32.totalorder %s206, %s222
    %p224 = scmp.eq.s32.totalorder %s20, 0
    %p225 = por %p223, %p224
    %p226 = scmp.le.s32.totalorder 1, %s14
    %p227 = scmp.lt.s32.totalorder %s14, 5
    %p228 = pnand %p226, %p227
    %p229 = pneg %p228
    // Predicated region
    $region9: #{_lambda_.1} parent=5 // pred_check
      _
    $region10: #{_lambda_.1} parent=5 // pred_check_branch
      %231 = sbr.rel (%p228) target = $region12
    $region11: #{_lambda_.1} parent=5 // pred_region
      %s232 = ssub.s32 %s14, 1
      // Predicated region
      $region13: #{_lambda_.1} parent=11 // pred_check
        %p233 = pneg %p87
      $region14: #{_lambda_.1} parent=11 // pred_check_branch
        %235 = sbr.rel (%p233) target = $region16
      $region15: #{_lambda_.1} parent=11 // pred_region
        _
      $region16: #{_lambda_.1} parent=11 // pred_fallthru
        _
      // Predicated region
      $region17: #{_lambda_.1} parent=11 // pred_check
        %p236 = pneg %p108
      $region18: #{_lambda_.1} parent=11 // pred_check_branch
        %238 = sbr.rel (%p236) target = $region20
      $region19: #{_lambda_.1} parent=11 // pred_region
        _
      $region20: #{_lambda_.1} parent=11 // pred_fallthru
        _
      // Predicated region
      $region21: #{_lambda_.1} parent=11 // pred_check
        %p239 = pneg %p129
      $region22: #{_lambda_.1} parent=11 // pred_check_branch
        %241 = sbr.rel (%p239) target = $region24
      $region23: #{_lambda_.1} parent=11 // pred_region
        _
      $region24: #{_lambda_.1} parent=11 // pred_fallthru
        _
      // Predicated region
      $region25: #{_lambda_.1} parent=11 // pred_check
        %p242 = pneg %p150
      $region26: #{_lambda_.1} parent=11 // pred_check_branch
        %244 = sbr.rel (%p242) target = $region28
      $region27: #{_lambda_.1} parent=11 // pred_region
        _
      $region28: #{_lambda_.1} parent=11 // pred_fallthru
        _
      // Predicated region
      $region29: #{_lambda_.1} parent=11 // pred_check
        %p245 = pneg %p171
      $region30: #{_lambda_.1} parent=11 // pred_check_branch
        %247 = sbr.rel (%p245) target = $region32
      $region31: #{_lambda_.1} parent=11 // pred_region
        _
      $region32: #{_lambda_.1} parent=11 // pred_fallthru
        _
      // Predicated region
      $region33: #{_lambda_.1} parent=11 // pred_check
        %p248 = pneg %p192
      $region34: #{_lambda_.1} parent=11 // pred_check_branch
        %250 = sbr.rel (%p248) target = $region36
      $region35: #{_lambda_.1} parent=11 // pred_region
        _
      $region36: #{_lambda_.1} parent=11 // pred_fallthru
        _
    $region12: #{_lambda_.1} parent=5 // pred_fallthru
      _
    %p251 = scmp.lt.s32.totalorder %s14, 4
    // Predicated region
    $region37: #{_lambda_.1} parent=5 // pred_check
      %p252 = pneg %p251
    $region38: #{_lambda_.1} parent=5 // pred_check_branch
      %254 = sbr.rel (%p252) target = $region40
    $region39: #{_lambda_.1} parent=5 // pred_region
      // Predicated region
      $region41: #{_lambda_.1} parent=39 // pred_check
        %p255 = pneg %p34
      $region42: #{_lambda_.1} parent=39 // pred_check_branch
        %257 = sbr.rel (%p255) target = $region44
      $region43: #{_lambda_.1} parent=39 // pred_region
        %p258 = scmp.lt.s32.totalorder %s14, 3
        %s259 = scalar_select %p258, %s14, 3
        %s260 = smul.addr %s259, 16
        %s261 = smul.addr %s260, 8
        %s262 = scalar_lea.vmem %s0, %s261
      $region44: #{_lambda_.1} parent=39 // pred_fallthru
        _
      // Predicated region
      $region45: #{_lambda_.1} parent=39 // pred_check
        %p263 = pneg %p60
      $region46: #{_lambda_.1} parent=39 // pred_check_branch
        %265 = sbr.rel (%p263) target = $region48
      $region47: #{_lambda_.1} parent=39 // pred_region
        %p266 = scmp.lt.s32.totalorder %s14, 3
        %s267 = scalar_select %p266, %s14, 3
        %s268 = smul.addr %s267, 16
        %s269 = smul.addr %s268, 8
        %s270 = scalar_lea.vmem %s1, %s269
      $region48: #{_lambda_.1} parent=39 // pred_fallthru
        _
    $region40: #{_lambda_.1} parent=5 // pred_fallthru
      _
    %p271 = scmp.le.s32.totalorder 1, %s14
    %p272 = scmp.lt.s32.totalorder %s14, 5
    %p273 = pnand %p271, %p272
    %p274 = pneg %p273
    // Predicated region
    $region49: #{_lambda_.1} parent=5 // pred_check
      _
    $region50: #{_lambda_.1} parent=5 // pred_check_branch
      %276 = sbr.rel (%p273) target = $region52
    $region51: #{_lambda_.1} parent=5 // pred_region
      %s277 = ssub.s32 %s14, 1
      %p278 = scmp.lt.s32.totalorder %s19, 3
      %s279 = scalar_select %p278, %s19, 3
      %s280 = smul.addr %s279, 16
      %s281 = smul.addr %s280, 8
      %s282 = scalar_lea.vmem %s0, %s281
      %p283 = pneg %p40
      %p284 = pneg %p37
      %p285 = scmp.lt.s32.totalorder %s19, 3
      %s286 = scalar_select %p285, %s19, 3
      %s287 = smul.addr %s286, 16
      %s288 = smul.addr %s287, 8
      %s289 = scalar_lea.vmem %s1, %s288
      %p290 = pneg %p66
      %p291 = pneg %p63
      %p292 = pneg %p87
      %p293 = pneg %p84
      %p294 = pneg %p108
      %p295 = pneg %p105
      %p296 = pneg %p129
      %p297 = pneg %p126
      %p298 = pneg %p150
      %p299 = pneg %p147
      %p300 = pneg %p171
      %p301 = pneg %p168
      %p302 = pneg %p192
      %p303 = pneg %p189
      %p304 = pneg %p218
      %p305 = pneg %p215
      %p306 = scmp.lt.s32.totalorder %s19, 3
      %s307 = scalar_select %p306, %s19, 3
      %s308 = smul.addr %s307, 16
      %s309 = smul.addr %s308, 8
      %s310 = scalar_lea.vmem %s8, %s309
      %p311 = scmp.lt.s32.totalorder %s19, 3
      %s312 = scalar_select %p311, %s19, 3
      %s313 = smul.addr %s312, 16
      %s314 = smul.addr %s313, 8
      %s315 = scalar_lea.vmem %s0, %s314
      %p316 = scmp.lt.s32.totalorder %s19, 3
      %s317 = scalar_select %p316, %s19, 3
      %s318 = smul.addr %s317, 16
      %s319 = smul.addr %s318, 8
      %s320 = scalar_lea.vmem %s1, %s319
      %p321 = scmp.lt.s32.totalorder %s19, 3
      %s322 = scalar_select %p321, %s19, 3
      %s323 = smul.addr %s322, 16
      %s324 = smul.addr %s323, 8
      %s325 = scalar_lea.vmem %s8, %s324
      %v326 = vld [vmem:[%s315] sm:$0xff]
      %v327 = vld [vmem:[%s315 + $0x8] sm:$0xff]
      %v328 = vld [vmem:[%s315 + $0x10] sm:$0xff]
      %v329 = vld [vmem:[%s315 + $0x18] sm:$0xff]
      %v330 = vld [vmem:[%s315 + $0x20] sm:$0xff]
      %v331 = vld [vmem:[%s315 + $0x28] sm:$0xff]
      %v332 = vld [vmem:[%s315 + $0x30] sm:$0xff]
      %v333 = vld [vmem:[%s315 + $0x38] sm:$0xff]
      %v334 = vld [vmem:[%s315 + $0x40] sm:$0xff]
      %v335 = vld [vmem:[%s315 + $0x48] sm:$0xff]
      %v336 = vld [vmem:[%s315 + $0x50] sm:$0xff]
      %v337 = vld [vmem:[%s315 + $0x58] sm:$0xff]
      %v338 = vld [vmem:[%s315 + $0x60] sm:$0xff]
      %v339 = vld [vmem:[%s315 + $0x68] sm:$0xff]
      %v340 = vld [vmem:[%s315 + $0x70] sm:$0xff]
      %v341 = vld [vmem:[%s315 + $0x78] sm:$0xff]
      %v342 = vld [vmem:[%s320] sm:$0xff]
      %v343 = vld [vmem:[%s320 + $0x8] sm:$0xff]
      %v344 = vld [vmem:[%s320 + $0x10] sm:$0xff]
      %v345 = vld [vmem:[%s320 + $0x18] sm:$0xff]
      %v346 = vld [vmem:[%s320 + $0x20] sm:$0xff]
      %v347 = vld [vmem:[%s320 + $0x28] sm:$0xff]
      %v348 = vld [vmem:[%s320 + $0x30] sm:$0xff]
      %v349 = vld [vmem:[%s320 + $0x38] sm:$0xff]
      %v350 = vld [vmem:[%s320 + $0x40] sm:$0xff]
      %v351 = vld [vmem:[%s320 + $0x48] sm:$0xff]
      %v352 = vld [vmem:[%s320 + $0x50] sm:$0xff]
      %v353 = vld [vmem:[%s320 + $0x58] sm:$0xff]
      %v354 = vld [vmem:[%s320 + $0x60] sm:$0xff]
      %v355 = vld [vmem:[%s320 + $0x68] sm:$0xff]
      %v356 = vld [vmem:[%s320 + $0x70] sm:$0xff]
      %v357 = vld [vmem:[%s320 + $0x78] sm:$0xff]
      %v358 = vld [vmem:[%s2] sm:$0xff]
      %v359 = vld [vmem:[%s2 + $0x8] sm:$0xff]
      %v360 = vld [vmem:[%s2 + $0x10] sm:$0xff]
      %v361 = vld [vmem:[%s2 + $0x18] sm:$0xff]
      %v362 = vld [vmem:[%s2 + $0x20] sm:$0xff]
      %v363 = vld [vmem:[%s2 + $0x28] sm:$0xff]
      %v364 = vld [vmem:[%s2 + $0x30] sm:$0xff]
      %v365 = vld [vmem:[%s2 + $0x38] sm:$0xff]
      %v366 = vld [vmem:[%s2 + $0x40] sm:$0xff]
      %v367 = vld [vmem:[%s2 + $0x48] sm:$0xff]
      %v368 = vld [vmem:[%s2 + $0x50] sm:$0xff]
      %v369 = vld [vmem:[%s2 + $0x58] sm:$0xff]
      %v370 = vld [vmem:[%s2 + $0x60] sm:$0xff]
      %v371 = vld [vmem:[%s2 + $0x68] sm:$0xff]
      %v372 = vld [vmem:[%s2 + $0x70] sm:$0xff]
      %v373 = vld [vmem:[%s2 + $0x78] sm:$0xff]
      %374 = vmatprep.subr.mxu0 0.0
      %375 = vmatpush1.msra.mxu0 %v358
      %376 = vmatprep.subr.mxu0 0.0
      %377 = vmatpush1.msra.mxu0 %v359
      %378 = vmatprep.subr.mxu0 0.0
      %379 = vmatpush1.msra.mxu0 %v360
      %380 = vmatprep.subr.mxu0 0.0
      %381 = vmatpush1.msra.mxu0 %v361
      %382 = vmatprep.subr.mxu0 0.0
      %383 = vmatpush1.msra.mxu0 %v362
      %384 = vmatprep.subr.mxu0 0.0
      %385 = vmatpush1.msra.mxu0 %v363
      %386 = vmatprep.subr.mxu0 0.0
      %387 = vmatpush1.msra.mxu0 %v364
      %388 = vmatprep.subr.mxu0 0.0
      %389 = vmatpush1.msra.mxu0 %v365
      %390 = vmatprep.subr.mxu0 0.0
      %391 = vmatpush1.msra.mxu0 %v366
      %392 = vmatprep.subr.mxu0 0.0
      %393 = vmatpush1.msra.mxu0 %v367
      %394 = vmatprep.subr.mxu0 0.0
      %395 = vmatpush1.msra.mxu0 %v368
      %396 = vmatprep.subr.mxu0 0.0
      %397 = vmatpush1.msra.mxu0 %v369
      %398 = vmatprep.subr.mxu0 0.0
      %399 = vmatpush1.msra.mxu0 %v370
      %400 = vmatprep.subr.mxu0 0.0
      %401 = vmatpush1.msra.mxu0 %v371
      %402 = vmatprep.subr.mxu0 0.0
      %403 = vmatpush1.msra.mxu0 %v372
      %404 = vmatprep.subr.mxu0 0.0
      %405 = vmatpush1.msra.mxu0 %v373
      %406 = vmatprep.subr.mxu0 0.0
      %407 = vmatpush1.msra.mxu0 0.0
      %408 = vmatprep.subr.mxu0 0.0
      %409 = vmatpush1.msra.mxu0 0.0
      %410 = vmatprep.subr.mxu0 0.0
      %411 = vmatpush1.msra.mxu0 0.0
      %412 = vmatprep.subr.mxu0 0.0
      %413 = vmatpush1.msra.mxu0 0.0
      %414 = vmatprep.subr.mxu0 0.0
      %415 = vmatpush1.msra.mxu0 0.0
      %416 = vmatprep.subr.mxu0 0.0
      %417 = vmatpush1.msra.mxu0 0.0
      %418 = vmatprep.subr.mxu0 0.0
      %419 = vmatpush1.msra.mxu0 0.0
      %420 = vmatprep.subr.mxu0 0.0
      %421 = vmatpush1.msra.mxu0 0.0
      %422 = vmatprep.subr.mxu0 0.0
      %423 = vmatpush1.msra.mxu0 0.0
      %424 = vmatprep.subr.mxu0 0.0
      %425 = vmatpush1.msra.mxu0 0.0
      %426 = vmatprep.subr.mxu0 0.0
      %427 = vmatpush1.msra.mxu0 0.0
      %428 = vmatprep.subr.mxu0 0.0
      %429 = vmatpush1.msra.mxu0 0.0
      %430 = vmatprep.subr.mxu0 0.0
      %431 = vmatpush1.msra.mxu0 0.0
      %432 = vmatprep.subr.mxu0 0.0
      %433 = vmatpush1.msra.mxu0 0.0
      %434 = vmatprep.subr.mxu0 0.0
      %435 = vmatpush1.msra.mxu0 0.0
      %436 = vmatprep.subr.mxu0 0.0
      %437 = vmatpush1.msra.mxu0 0.0
      %438 = vmatprep.mubr.f32.mxu0 0.0
      %439 = vmatmul.mubr.f32.gmra.mrb[0].mxu0 %v342
      %v440 = vpop.f32.mrb[0].mxu0
      %v441 = vadd.f32 0.0, %v440
      %v442 = vpop.f32.mrb[0].mxu0
      %443 = vmatprep.mubr.f32.mxu0 0.0
      %444 = vmatmul.mubr.f32.gmra.mrb[0].mxu0 %v343
      %v445 = vpop.f32.mrb[0].mxu0
      %v446 = vadd.f32 0.0, %v445
      %v447 = vpop.f32.mrb[0].mxu0
      %448 = vmatprep.mubr.f32.mxu0 0.0
      %449 = vmatmul.mubr.f32.gmra.mrb[0].mxu0 %v344
      %v450 = vpop.f32.mrb[0].mxu0
      %v451 = vadd.f32 0.0, %v450
      %v452 = vpop.f32.mrb[0].mxu0
      %453 = vmatprep.mubr.f32.mxu0 0.0
      %454 = vmatmul.mubr.f32.gmra.mrb[0].mxu0 %v345
      %v455 = vpop.f32.mrb[0].mxu0
      %v456 = vadd.f32 0.0, %v455
      %v457 = vpop.f32.mrb[0].mxu0
      %458 = vmatprep.mubr.f32.mxu0 0.0
      %459 = vmatmul.mubr.f32.gmra.mrb[0].mxu0 %v346
      %v460 = vpop.f32.mrb[0].mxu0
      %v461 = vadd.f32 0.0, %v460
      %v462 = vpop.f32.mrb[0].mxu0
      %463 = vmatprep.mubr.f32.mxu0 0.0
      %464 = vmatmul.mubr.f32.gmra.mrb[0].mxu0 %v347
      %v465 = vpop.f32.mrb[0].mxu0
      %v466 = vadd.f32 0.0, %v465
      %v467 = vpop.f32.mrb[0].mxu0
      %468 = vmatprep.mubr.f32.mxu0 0.0
      %469 = vmatmul.mubr.f32.gmra.mrb[0].mxu0 %v348
      %v470 = vpop.f32.mrb[0].mxu0
      %v471 = vadd.f32 0.0, %v470
      %v472 = vpop.f32.mrb[0].mxu0
      %473 = vmatprep.mubr.f32.mxu0 0.0
      %474 = vmatmul.mubr.f32.gmra.mrb[0].mxu0 %v349
      %v475 = vpop.f32.mrb[0].mxu0
      %v476 = vadd.f32 0.0, %v475
      %v477 = vpop.f32.mrb[0].mxu0
      %478 = vmatprep.mubr.f32.mxu0 0.0
      %479 = vmatmul.mubr.f32.gmra.mrb[0].mxu0 %v350
      %v480 = vpop.f32.mrb[0].mxu0
      %v481 = vadd.f32 0.0, %v480
      %v482 = vpop.f32.mrb[0].mxu0
      %483 = vmatprep.mubr.f32.mxu0 0.0
      %484 = vmatmul.mubr.f32.gmra.mrb[0].mxu0 %v351
      %v485 = vpop.f32.mrb[0].mxu0
      %v486 = vadd.f32 0.0, %v485
      %v487 = vpop.f32.mrb[0].mxu0
      %488 = vmatprep.mubr.f32.mxu0 0.0
      %489 = vmatmul.mubr.f32.gmra.mrb[0].mxu0 %v352
      %v490 = vpop.f32.mrb[0].mxu0
      %v491 = vadd.f32 0.0, %v490
      %v492 = vpop.f32.mrb[0].mxu0
      %493 = vmatprep.mubr.f32.mxu0 0.0
      %494 = vmatmul.mubr.f32.gmra.mrb[0].mxu0 %v353
      %v495 = vpop.f32.mrb[0].mxu0
      %v496 = vadd.f32 0.0, %v495
      %v497 = vpop.f32.mrb[0].mxu0
      %498 = vmatprep.mubr.f32.mxu0 0.0
      %499 = vmatmul.mubr.f32.gmra.mrb[0].mxu0 %v354
      %v500 = vpop.f32.mrb[0].mxu0
      %v501 = vadd.f32 0.0, %v500
      %v502 = vpop.f32.mrb[0].mxu0
      %503 = vmatprep.mubr.f32.mxu0 0.0
      %504 = vmatmul.mubr.f32.gmra.mrb[0].mxu0 %v355
      %v505 = vpop.f32.mrb[0].mxu0
      %v506 = vadd.f32 0.0, %v505
      %v507 = vpop.f32.mrb[0].mxu0
      %508 = vmatprep.mubr.f32.mxu0 0.0
      %509 = vmatmul.mubr.f32.gmra.mrb[0].mxu0 %v356
      %v510 = vpop.f32.mrb[0].mxu0
      %v511 = vadd.f32 0.0, %v510
      %v512 = vpop.f32.mrb[0].mxu0
      %513 = vmatprep.mubr.f32.mxu0 0.0
      %514 = vmatmul.mubr.f32.gmra.mrb[0].mxu0 %v357
      %v515 = vpop.f32.mrb[0].mxu0
      %v516 = vadd.f32 0.0, %v515
      %v517 = vpop.f32.mrb[0].mxu0
      %518 = vdwg.mxu0
      %v519 = vld [vmem:[%s3] sm:$0x1]
      %v521 = vlaneseq
      %v522 = vshrl.u32 %v521, 7
      %v523 = vsub.s32 0, %v522
      %v524 = vrot.slane %v519, %v523
      %526 = vmatprep.subr.mxu0 0.0
      %527 = vmatpush1.msra.mxu0 %v441
      %528 = vmatprep.subr.mxu0 0.0
      %529 = vmatpush1.msra.mxu0 %v446
      %530 = vmatprep.subr.mxu0 0.0
      %531 = vmatpush1.msra.mxu0 %v451
      %532 = vmatprep.subr.mxu0 0.0
      %533 = vmatpush1.msra.mxu0 %v456
      %534 = vmatprep.subr.mxu0 0.0
      %535 = vmatpush1.msra.mxu0 %v461
      %536 = vmatprep.subr.mxu0 0.0
      %537 = vmatpush1.msra.mxu0 %v466
      %538 = vmatprep.subr.mxu0 0.0
      %539 = vmatpush1.msra.mxu0 %v471
      %540 = vmatprep.subr.mxu0 0.0
      %541 = vmatpush1.msra.mxu0 %v476
      %542 = vmatprep.subr.mxu0 0.0
      %543 = vmatpush1.msra.mxu0 %v481
      %544 = vmatprep.subr.mxu0 0.0
      %545 = vmatpush1.msra.mxu0 %v486
      %546 = vmatprep.subr.mxu0 0.0
      %547 = vmatpush1.msra.mxu0 %v491
      %548 = vmatprep.subr.mxu0 0.0
      %549 = vmatpush1.msra.mxu0 %v496
      %550 = vmatprep.subr.mxu0 0.0
      %551 = vmatpush1.msra.mxu0 %v501
      %552 = vmatprep.subr.mxu0 0.0
      %553 = vmatpush1.msra.mxu0 %v506
      %554 = vmatprep.subr.mxu0 0.0
      %555 = vmatpush1.msra.mxu0 %v511
      %556 = vmatprep.subr.mxu0 0.0
      %557 = vmatpush1.msra.mxu0 %v516
      %558 = vmatprep.subr.mxu0 0.0
      %559 = vmatpush1.msra.mxu0 0.0
      %560 = vmatprep.subr.mxu0 0.0
      %561 = vmatpush1.msra.mxu0 0.0
      %562 = vmatprep.subr.mxu0 0.0
      %563 = vmatpush1.msra.mxu0 0.0
      %564 = vmatprep.subr.mxu0 0.0
      %565 = vmatpush1.msra.mxu0 0.0
      %566 = vmatprep.subr.mxu0 0.0
      %567 = vmatpush1.msra.mxu0 0.0
      %568 = vmatprep.subr.mxu0 0.0
      %569 = vmatpush1.msra.mxu0 0.0
      %570 = vmatprep.subr.mxu0 0.0
      %571 = vmatpush1.msra.mxu0 0.0
      %572 = vmatprep.subr.mxu0 0.0
      %573 = vmatpush1.msra.mxu0 0.0
      %574 = vmatprep.subr.mxu0 0.0
      %575 = vmatpush1.msra.mxu0 0.0
      %576 = vmatprep.subr.mxu0 0.0
      %577 = vmatpush1.msra.mxu0 0.0
      %578 = vmatprep.subr.mxu0 0.0
      %579 = vmatpush1.msra.mxu0 0.0
      %580 = vmatprep.subr.mxu0 0.0
      %581 = vmatpush1.msra.mxu0 0.0
      %582 = vmatprep.subr.mxu0 0.0
      %583 = vmatpush1.msra.mxu0 0.0
      %584 = vmatprep.subr.mxu0 0.0
      %585 = vmatpush1.msra.mxu0 0.0
      %586 = vmatprep.subr.mxu0 0.0
      %587 = vmatpush1.msra.mxu0 0.0
      %588 = vmatprep.subr.mxu0 0.0
      %589 = vmatpush1.msra.mxu0 0.0
      %590 = vmatprep.mubr.f32.mxu0 0.0
      %591 = vmatmul.mubr.f32.gmra.mrb[0].mxu0 %v326
      %v592 = vpop.f32.mrb[0].mxu0
      %v593 = vadd.f32 %v524, %v592
      %v594 = vpop.f32.mrb[0].mxu0
      %595 = vmatprep.mubr.f32.mxu0 0.0
      %596 = vmatmul.mubr.f32.gmra.mrb[0].mxu0 %v327
      %v597 = vpop.f32.mrb[0].mxu0
      %v598 = vadd.f32 %v524, %v597
      %v599 = vpop.f32.mrb[0].mxu0
      %600 = vmatprep.mubr.f32.mxu0 0.0
      %601 = vmatmul.mubr.f32.gmra.mrb[0].mxu0 %v328
      %v602 = vpop.f32.mrb[0].mxu0
      %v603 = vadd.f32 %v524, %v602
      %v604 = vpop.f32.mrb[0].mxu0
      %605 = vmatprep.mubr.f32.mxu0 0.0
      %606 = vmatmul.mubr.f32.gmra.mrb[0].mxu0 %v329
      %v607 = vpop.f32.mrb[0].mxu0
      %v608 = vadd.f32 %v524, %v607
      %v609 = vpop.f32.mrb[0].mxu0
      %610 = vmatprep.mubr.f32.mxu0 0.0
      %611 = vmatmul.mubr.f32.gmra.mrb[0].mxu0 %v330
      %v612 = vpop.f32.mrb[0].mxu0
      %v613 = vadd.f32 %v524, %v612
      %v614 = vpop.f32.mrb[0].mxu0
      %615 = vmatprep.mubr.f32.mxu0 0.0
      %616 = vmatmul.mubr.f32.gmra.mrb[0].mxu0 %v331
      %v617 = vpop.f32.mrb[0].mxu0
      %v618 = vadd.f32 %v524, %v617
      %v619 = vpop.f32.mrb[0].mxu0
      %620 = vmatprep.mubr.f32.mxu0 0.0
      %621 = vmatmul.mubr.f32.gmra.mrb[0].mxu0 %v332
      %v622 = vpop.f32.mrb[0].mxu0
      %v623 = vadd.f32 %v524, %v622
      %v624 = vpop.f32.mrb[0].mxu0
      %625 = vmatprep.mubr.f32.mxu0 0.0
      %626 = vmatmul.mubr.f32.gmra.mrb[0].mxu0 %v333
      %v627 = vpop.f32.mrb[0].mxu0
      %v628 = vadd.f32 %v524, %v627
      %v629 = vpop.f32.mrb[0].mxu0
      %630 = vmatprep.mubr.f32.mxu0 0.0
      %631 = vmatmul.mubr.f32.gmra.mrb[0].mxu0 %v334
      %v632 = vpop.f32.mrb[0].mxu0
      %v633 = vadd.f32 %v524, %v632
      %v634 = vpop.f32.mrb[0].mxu0
      %635 = vmatprep.mubr.f32.mxu0 0.0
      %636 = vmatmul.mubr.f32.gmra.mrb[0].mxu0 %v335
      %v637 = vpop.f32.mrb[0].mxu0
      %v638 = vadd.f32 %v524, %v637
      %v639 = vpop.f32.mrb[0].mxu0
      %640 = vmatprep.mubr.f32.mxu0 0.0
      %641 = vmatmul.mubr.f32.gmra.mrb[0].mxu0 %v336
      %v642 = vpop.f32.mrb[0].mxu0
      %v643 = vadd.f32 %v524, %v642
      %v644 = vpop.f32.mrb[0].mxu0
      %645 = vmatprep.mubr.f32.mxu0 0.0
      %646 = vmatmul.mubr.f32.gmra.mrb[0].mxu0 %v337
      %v647 = vpop.f32.mrb[0].mxu0
      %v648 = vadd.f32 %v524, %v647
      %v649 = vpop.f32.mrb[0].mxu0
      %650 = vmatprep.mubr.f32.mxu0 0.0
      %651 = vmatmul.mubr.f32.gmra.mrb[0].mxu0 %v338
      %v652 = vpop.f32.mrb[0].mxu0
      %v653 = vadd.f32 %v524, %v652
      %v654 = vpop.f32.mrb[0].mxu0
      %655 = vmatprep.mubr.f32.mxu0 0.0
      %656 = vmatmul.mubr.f32.gmra.mrb[0].mxu0 %v339
      %v657 = vpop.f32.mrb[0].mxu0
      %v658 = vadd.f32 %v524, %v657
      %v659 = vpop.f32.mrb[0].mxu0
      %660 = vmatprep.mubr.f32.mxu0 0.0
      %661 = vmatmul.mubr.f32.gmra.mrb[0].mxu0 %v340
      %v662 = vpop.f32.mrb[0].mxu0
      %v663 = vadd.f32 %v524, %v662
      %v664 = vpop.f32.mrb[0].mxu0
      %665 = vmatprep.mubr.f32.mxu0 0.0
      %666 = vmatmul.mubr.f32.gmra.mrb[0].mxu0 %v341
      %v667 = vpop.f32.mrb[0].mxu0
      %v668 = vadd.f32 %v524, %v667
      %v669 = vpop.f32.mrb[0].mxu0
      %670 = vdwg.mxu0
      %v671 = vmax.f32 %v593, 0.0
      %v672 = vmax.f32 %v598, 0.0
      %v673 = vmax.f32 %v603, 0.0
      %v674 = vmax.f32 %v608, 0.0
      %v675 = vmax.f32 %v613, 0.0
      %v676 = vmax.f32 %v618, 0.0
      %v677 = vmax.f32 %v623, 0.0
      %v678 = vmax.f32 %v628, 0.0
      %v679 = vmax.f32 %v633, 0.0
      %v680 = vmax.f32 %v638, 0.0
      %v681 = vmax.f32 %v643, 0.0
      %v682 = vmax.f32 %v648, 0.0
      %v683 = vmax.f32 %v653, 0.0
      %v684 = vmax.f32 %v658, 0.0
      %v685 = vmax.f32 %v663, 0.0
      %v686 = vmax.f32 %v668, 0.0
      %v687 = vld [vmem:[%s4] sm:$0xff]
      %v688 = vld [vmem:[%s4 + $0x8] sm:$0xff]
      %v689 = vld [vmem:[%s4 + $0x10] sm:$0xff]
      %v690 = vld [vmem:[%s4 + $0x18] sm:$0xff]
      %v691 = vld [vmem:[%s4 + $0x20] sm:$0xff]
      %v692 = vld [vmem:[%s4 + $0x28] sm:$0xff]
      %v693 = vld [vmem:[%s4 + $0x30] sm:$0xff]
      %v694 = vld [vmem:[%s4 + $0x38] sm:$0xff]
      %v695 = vld [vmem:[%s4 + $0x40] sm:$0xff]
      %v696 = vld [vmem:[%s4 + $0x48] sm:$0xff]
      %v697 = vld [vmem:[%s4 + $0x50] sm:$0xff]
      %v698 = vld [vmem:[%s4 + $0x58] sm:$0xff]
      %v699 = vld [vmem:[%s4 + $0x60] sm:$0xff]
      %v700 = vld [vmem:[%s4 + $0x68] sm:$0xff]
      %v701 = vld [vmem:[%s4 + $0x70] sm:$0xff]
      %v702 = vld [vmem:[%s4 + $0x78] sm:$0xff]
      %703 = vmatprep.subr.mxu0 0.0
      %704 = vmatpush1.msra.mxu0 %v687
      %705 = vmatprep.subr.mxu0 0.0
      %706 = vmatpush1.msra.mxu0 %v688
      %707 = vmatprep.subr.mxu0 0.0
      %708 = vmatpush1.msra.mxu0 %v689
      %709 = vmatprep.subr.mxu0 0.0
      %710 = vmatpush1.msra.mxu0 %v690
      %711 = vmatprep.subr.mxu0 0.0
      %712 = vmatpush1.msra.mxu0 %v691
      %713 = vmatprep.subr.mxu0 0.0
      %714 = vmatpush1.msra.mxu0 %v692
      %715 = vmatprep.subr.mxu0 0.0
      %716 = vmatpush1.msra.mxu0 %v693
      %717 = vmatprep.subr.mxu0 0.0
      %718 = vmatpush1.msra.mxu0 %v694
      %719 = vmatprep.subr.mxu0 0.0
      %720 = vmatpush1.msra.mxu0 %v695
      %721 = vmatprep.subr.mxu0 0.0
      %722 = vmatpush1.msra.mxu0 %v696
      %723 = vmatprep.subr.mxu0 0.0
      %724 = vmatpush1.msra.mxu0 %v697
      %725 = vmatprep.subr.mxu0 0.0
      %726 = vmatpush1.msra.mxu0 %v698
      %727 = vmatprep.subr.mxu0 0.0
      %728 = vmatpush1.msra.mxu0 %v699
      %729 = vmatprep.subr.mxu0 0.0
      %730 = vmatpush1.msra.mxu0 %v700
      %731 = vmatprep.subr.mxu0 0.0
      %732 = vmatpush1.msra.mxu0 %v701
      %733 = vmatprep.subr.mxu0 0.0
      %734 = vmatpush1.msra.mxu0 %v702
      %735 = vmatprep.subr.mxu0 0.0
      %736 = vmatpush1.msra.mxu0 0.0
      %737 = vmatprep.subr.mxu0 0.0
      %738 = vmatpush1.msra.mxu0 0.0
      %739 = vmatprep.subr.mxu0 0.0
      %740 = vmatpush1.msra.mxu0 0.0
      %741 = vmatprep.subr.mxu0 0.0
      %742 = vmatpush1.msra.mxu0 0.0
      %743 = vmatprep.subr.mxu0 0.0
      %744 = vmatpush1.msra.mxu0 0.0
      %745 = vmatprep.subr.mxu0 0.0
      %746 = vmatpush1.msra.mxu0 0.0
      %747 = vmatprep.subr.mxu0 0.0
      %748 = vmatpush1.msra.mxu0 0.0
      %749 = vmatprep.subr.mxu0 0.0
      %750 = vmatpush1.msra.mxu0 0.0
      %751 = vmatprep.subr.mxu0 0.0
      %752 = vmatpush1.msra.mxu0 0.0
      %753 = vmatprep.subr.mxu0 0.0
      %754 = vmatpush1.msra.mxu0 0.0
      %755 = vmatprep.subr.mxu0 0.0
      %756 = vmatpush1.msra.mxu0 0.0
      %757 = vmatprep.subr.mxu0 0.0
      %758 = vmatpush1.msra.mxu0 0.0
      %759 = vmatprep.subr.mxu0 0.0
      %760 = vmatpush1.msra.mxu0 0.0
      %761 = vmatprep.subr.mxu0 0.0
      %762 = vmatpush1.msra.mxu0 0.0
      %763 = vmatprep.subr.mxu0 0.0
      %764 = vmatpush1.msra.mxu0 0.0
      %765 = vmatprep.subr.mxu0 0.0
      %766 = vmatpush1.msra.mxu0 0.0
      %767 = vmatprep.mubr.f32.mxu0 0.0
      %768 = vmatmul.mubr.f32.gmra.mrb[0].mxu0 %v671
      %v769 = vpop.f32.mrb[0].mxu0
      %v770 = vadd.f32 0.0, %v769
      %v771 = vpop.f32.mrb[0].mxu0
      %772 = vmatprep.mubr.f32.mxu0 0.0
      %773 = vmatmul.mubr.f32.gmra.mrb[0].mxu0 %v672
      %v774 = vpop.f32.mrb[0].mxu0
      %v775 = vadd.f32 0.0, %v774
      %v776 = vpop.f32.mrb[0].mxu0
      %777 = vmatprep.mubr.f32.mxu0 0.0
      %778 = vmatmul.mubr.f32.gmra.mrb[0].mxu0 %v673
      %v779 = vpop.f32.mrb[0].mxu0
      %v780 = vadd.f32 0.0, %v779
      %v781 = vpop.f32.mrb[0].mxu0
      %782 = vmatprep.mubr.f32.mxu0 0.0
      %783 = vmatmul.mubr.f32.gmra.mrb[0].mxu0 %v674
      %v784 = vpop.f32.mrb[0].mxu0
      %v785 = vadd.f32 0.0, %v784
      %v786 = vpop.f32.mrb[0].mxu0
      %787 = vmatprep.mubr.f32.mxu0 0.0
      %788 = vmatmul.mubr.f32.gmra.mrb[0].mxu0 %v675
      %v789 = vpop.f32.mrb[0].mxu0
      %v790 = vadd.f32 0.0, %v789
      %v791 = vpop.f32.mrb[0].mxu0
      %792 = vmatprep.mubr.f32.mxu0 0.0
      %793 = vmatmul.mubr.f32.gmra.mrb[0].mxu0 %v676
      %v794 = vpop.f32.mrb[0].mxu0
      %v795 = vadd.f32 0.0, %v794
      %v796 = vpop.f32.mrb[0].mxu0
      %797 = vmatprep.mubr.f32.mxu0 0.0
      %798 = vmatmul.mubr.f32.gmra.mrb[0].mxu0 %v677
      %v799 = vpop.f32.mrb[0].mxu0
      %v800 = vadd.f32 0.0, %v799
      %v801 = vpop.f32.mrb[0].mxu0
      %802 = vmatprep.mubr.f32.mxu0 0.0
      %803 = vmatmul.mubr.f32.gmra.mrb[0].mxu0 %v678
      %v804 = vpop.f32.mrb[0].mxu0
      %v805 = vadd.f32 0.0, %v804
      %v806 = vpop.f32.mrb[0].mxu0
      %807 = vmatprep.mubr.f32.mxu0 0.0
      %808 = vmatmul.mubr.f32.gmra.mrb[0].mxu0 %v679
      %v809 = vpop.f32.mrb[0].mxu0
      %v810 = vadd.f32 0.0, %v809
      %v811 = vpop.f32.mrb[0].mxu0
      %812 = vmatprep.mubr.f32.mxu0 0.0
      %813 = vmatmul.mubr.f32.gmra.mrb[0].mxu0 %v680
      %v814 = vpop.f32.mrb[0].mxu0
      %v815 = vadd.f32 0.0, %v814
      %v816 = vpop.f32.mrb[0].mxu0
      %817 = vmatprep.mubr.f32.mxu0 0.0
      %818 = vmatmul.mubr.f32.gmra.mrb[0].mxu0 %v681
      %v819 = vpop.f32.mrb[0].mxu0
      %v820 = vadd.f32 0.0, %v819
      %v821 = vpop.f32.mrb[0].mxu0
      %822 = vmatprep.mubr.f32.mxu0 0.0
      %823 = vmatmul.mubr.f32.gmra.mrb[0].mxu0 %v682
      %v824 = vpop.f32.mrb[0].mxu0
      %v825 = vadd.f32 0.0, %v824
      %v826 = vpop.f32.mrb[0].mxu0
      %827 = vmatprep.mubr.f32.mxu0 0.0
      %828 = vmatmul.mubr.f32.gmra.mrb[0].mxu0 %v683
      %v829 = vpop.f32.mrb[0].mxu0
      %v830 = vadd.f32 0.0, %v829
      %v831 = vpop.f32.mrb[0].mxu0
      %832 = vmatprep.mubr.f32.mxu0 0.0
      %833 = vmatmul.mubr.f32.gmra.mrb[0].mxu0 %v684
      %v834 = vpop.f32.mrb[0].mxu0
      %v835 = vadd.f32 0.0, %v834
      %v836 = vpop.f32.mrb[0].mxu0
      %837 = vmatprep.mubr.f32.mxu0 0.0
      %838 = vmatmul.mubr.f32.gmra.mrb[0].mxu0 %v685
      %v839 = vpop.f32.mrb[0].mxu0
      %v840 = vadd.f32 0.0, %v839
      %v841 = vpop.f32.mrb[0].mxu0
      %842 = vmatprep.mubr.f32.mxu0 0.0
      %843 = vmatmul.mubr.f32.gmra.mrb[0].mxu0 %v686
      %v844 = vpop.f32.mrb[0].mxu0
      %v845 = vadd.f32 0.0, %v844
      %v846 = vpop.f32.mrb[0].mxu0
      %847 = vdwg.mxu0
      %v848 = vld [vmem:[%s5] sm:$0x1]
      %v850 = vlaneseq
      %v851 = vshrl.u32 %v850, 7
      %v852 = vsub.s32 0, %v851
      %v853 = vrot.slane %v848, %v852
      %855 = vmatprep.subr.mxu0 0.0
      %856 = vmatpush1.msra.mxu0 %v770
      %857 = vmatprep.subr.mxu0 0.0
      %858 = vmatpush1.msra.mxu0 %v775
      %859 = vmatprep.subr.mxu0 0.0
      %860 = vmatpush1.msra.mxu0 %v780
      %861 = vmatprep.subr.mxu0 0.0
      %862 = vmatpush1.msra.mxu0 %v785
      %863 = vmatprep.subr.mxu0 0.0
      %864 = vmatpush1.msra.mxu0 %v790
      %865 = vmatprep.subr.mxu0 0.0
      %866 = vmatpush1.msra.mxu0 %v795
      %867 = vmatprep.subr.mxu0 0.0
      %868 = vmatpush1.msra.mxu0 %v800
      %869 = vmatprep.subr.mxu0 0.0
      %870 = vmatpush1.msra.mxu0 %v805
      %871 = vmatprep.subr.mxu0 0.0
      %872 = vmatpush1.msra.mxu0 %v810
      %873 = vmatprep.subr.mxu0 0.0
      %874 = vmatpush1.msra.mxu0 %v815
      %875 = vmatprep.subr.mxu0 0.0
      %876 = vmatpush1.msra.mxu0 %v820
      %877 = vmatprep.subr.mxu0 0.0
      %878 = vmatpush1.msra.mxu0 %v825
      %879 = vmatprep.subr.mxu0 0.0
      %880 = vmatpush1.msra.mxu0 %v830
      %881 = vmatprep.subr.mxu0 0.0
      %882 = vmatpush1.msra.mxu0 %v835
      %883 = vmatprep.subr.mxu0 0.0
      %884 = vmatpush1.msra.mxu0 %v840
      %885 = vmatprep.subr.mxu0 0.0
      %886 = vmatpush1.msra.mxu0 %v845
      %887 = vmatprep.subr.mxu0 0.0
      %888 = vmatpush1.msra.mxu0 0.0
      %889 = vmatprep.subr.mxu0 0.0
      %890 = vmatpush1.msra.mxu0 0.0
      %891 = vmatprep.subr.mxu0 0.0
      %892 = vmatpush1.msra.mxu0 0.0
      %893 = vmatprep.subr.mxu0 0.0
      %894 = vmatpush1.msra.mxu0 0.0
      %895 = vmatprep.subr.mxu0 0.0
      %896 = vmatpush1.msra.mxu0 0.0
      %897 = vmatprep.subr.mxu0 0.0
      %898 = vmatpush1.msra.mxu0 0.0
      %899 = vmatprep.subr.mxu0 0.0
      %900 = vmatpush1.msra.mxu0 0.0
      %901 = vmatprep.subr.mxu0 0.0
      %902 = vmatpush1.msra.mxu0 0.0
      %903 = vmatprep.subr.mxu0 0.0
      %904 = vmatpush1.msra.mxu0 0.0
      %905 = vmatprep.subr.mxu0 0.0
      %906 = vmatpush1.msra.mxu0 0.0
      %907 = vmatprep.subr.mxu0 0.0
      %908 = vmatpush1.msra.mxu0 0.0
      %909 = vmatprep.subr.mxu0 0.0
      %910 = vmatpush1.msra.mxu0 0.0
      %911 = vmatprep.subr.mxu0 0.0
      %912 = vmatpush1.msra.mxu0 0.0
      %913 = vmatprep.subr.mxu0 0.0
      %914 = vmatpush1.msra.mxu0 0.0
      %915 = vmatprep.subr.mxu0 0.0
      %916 = vmatpush1.msra.mxu0 0.0
      %917 = vmatprep.subr.mxu0 0.0
      %918 = vmatpush1.msra.mxu0 0.0
      %919 = vmatprep.mubr.f32.mxu0 0.0
      %920 = vmatmul.mubr.f32.gmra.mrb[0].mxu0 %v326
      %v921 = vpop.f32.mrb[0].mxu0
      %v922 = vadd.f32 %v853, %v921
      %v923 = vpop.f32.mrb[0].mxu0
      %924 = vmatprep.mubr.f32.mxu0 0.0
      %925 = vmatmul.mubr.f32.gmra.mrb[0].mxu0 %v327
      %v926 = vpop.f32.mrb[0].mxu0
      %v927 = vadd.f32 %v853, %v926
      %v928 = vpop.f32.mrb[0].mxu0
      %929 = vmatprep.mubr.f32.mxu0 0.0
      %930 = vmatmul.mubr.f32.gmra.mrb[0].mxu0 %v328
      %v931 = vpop.f32.mrb[0].mxu0
      %v932 = vadd.f32 %v853, %v931
      %v933 = vpop.f32.mrb[0].mxu0
      %934 = vmatprep.mubr.f32.mxu0 0.0
      %935 = vmatmul.mubr.f32.gmra.mrb[0].mxu0 %v329
      %v936 = vpop.f32.mrb[0].mxu0
      %v937 = vadd.f32 %v853, %v936
      %v938 = vpop.f32.mrb[0].mxu0
      %939 = vmatprep.mubr.f32.mxu0 0.0
      %940 = vmatmul.mubr.f32.gmra.mrb[0].mxu0 %v330
      %v941 = vpop.f32.mrb[0].mxu0
      %v942 = vadd.f32 %v853, %v941
      %v943 = vpop.f32.mrb[0].mxu0
      %944 = vmatprep.mubr.f32.mxu0 0.0
      %945 = vmatmul.mubr.f32.gmra.mrb[0].mxu0 %v331
      %v946 = vpop.f32.mrb[0].mxu0
      %v947 = vadd.f32 %v853, %v946
      %v948 = vpop.f32.mrb[0].mxu0
      %949 = vmatprep.mubr.f32.mxu0 0.0
      %950 = vmatmul.mubr.f32.gmra.mrb[0].mxu0 %v332
      %v951 = vpop.f32.mrb[0].mxu0
      %v952 = vadd.f32 %v853, %v951
      %v953 = vpop.f32.mrb[0].mxu0
      %954 = vmatprep.mubr.f32.mxu0 0.0
      %955 = vmatmul.mubr.f32.gmra.mrb[0].mxu0 %v333
      %v956 = vpop.f32.mrb[0].mxu0
      %v957 = vadd.f32 %v853, %v956
      %v958 = vpop.f32.mrb[0].mxu0
      %959 = vmatprep.mubr.f32.mxu0 0.0
      %960 = vmatmul.mubr.f32.gmra.mrb[0].mxu0 %v334
      %v961 = vpop.f32.mrb[0].mxu0
      %v962 = vadd.f32 %v853, %v961
      %v963 = vpop.f32.mrb[0].mxu0
      %964 = vmatprep.mubr.f32.mxu0 0.0
      %965 = vmatmul.mubr.f32.gmra.mrb[0].mxu0 %v335
      %v966 = vpop.f32.mrb[0].mxu0
      %v967 = vadd.f32 %v853, %v966
      %v968 = vpop.f32.mrb[0].mxu0
      %969 = vmatprep.mubr.f32.mxu0 0.0
      %970 = vmatmul.mubr.f32.gmra.mrb[0].mxu0 %v336
      %v971 = vpop.f32.mrb[0].mxu0
      %v972 = vadd.f32 %v853, %v971
      %v973 = vpop.f32.mrb[0].mxu0
      %974 = vmatprep.mubr.f32.mxu0 0.0
      %975 = vmatmul.mubr.f32.gmra.mrb[0].mxu0 %v337
      %v976 = vpop.f32.mrb[0].mxu0
      %v977 = vadd.f32 %v853, %v976
      %v978 = vpop.f32.mrb[0].mxu0
      %979 = vmatprep.mubr.f32.mxu0 0.0
      %980 = vmatmul.mubr.f32.gmra.mrb[0].mxu0 %v338
      %v981 = vpop.f32.mrb[0].mxu0
      %v982 = vadd.f32 %v853, %v981
      %v983 = vpop.f32.mrb[0].mxu0
      %984 = vmatprep.mubr.f32.mxu0 0.0
      %985 = vmatmul.mubr.f32.gmra.mrb[0].mxu0 %v339
      %v986 = vpop.f32.mrb[0].mxu0
      %v987 = vadd.f32 %v853, %v986
      %v988 = vpop.f32.mrb[0].mxu0
      %989 = vmatprep.mubr.f32.mxu0 0.0
      %990 = vmatmul.mubr.f32.gmra.mrb[0].mxu0 %v340
      %v991 = vpop.f32.mrb[0].mxu0
      %v992 = vadd.f32 %v853, %v991
      %v993 = vpop.f32.mrb[0].mxu0
      %994 = vmatprep.mubr.f32.mxu0 0.0
      %995 = vmatmul.mubr.f32.gmra.mrb[0].mxu0 %v341
      %v996 = vpop.f32.mrb[0].mxu0
      %v997 = vadd.f32 %v853, %v996
      %v998 = vpop.f32.mrb[0].mxu0
      %999 = vdwg.mxu0
      %v1000 = vmax.f32 %v922, 0.0
      %v1001 = vmax.f32 %v927, 0.0
      %v1002 = vmax.f32 %v932, 0.0
      %v1003 = vmax.f32 %v937, 0.0
      %v1004 = vmax.f32 %v942, 0.0
      %v1005 = vmax.f32 %v947, 0.0
      %v1006 = vmax.f32 %v952, 0.0
      %v1007 = vmax.f32 %v957, 0.0
      %v1008 = vmax.f32 %v962, 0.0
      %v1009 = vmax.f32 %v967, 0.0
      %v1010 = vmax.f32 %v972, 0.0
      %v1011 = vmax.f32 %v977, 0.0
      %v1012 = vmax.f32 %v982, 0.0
      %v1013 = vmax.f32 %v987, 0.0
      %v1014 = vmax.f32 %v992, 0.0
      %v1015 = vmax.f32 %v997, 0.0
      %v1016 = vld [vmem:[%s6] sm:$0xff]
      %v1017 = vld [vmem:[%s6 + $0x8] sm:$0xff]
      %v1018 = vld [vmem:[%s6 + $0x10] sm:$0xff]
      %v1019 = vld [vmem:[%s6 + $0x18] sm:$0xff]
      %v1020 = vld [vmem:[%s6 + $0x20] sm:$0xff]
      %v1021 = vld [vmem:[%s6 + $0x28] sm:$0xff]
      %v1022 = vld [vmem:[%s6 + $0x30] sm:$0xff]
      %v1023 = vld [vmem:[%s6 + $0x38] sm:$0xff]
      %v1024 = vld [vmem:[%s6 + $0x40] sm:$0xff]
      %v1025 = vld [vmem:[%s6 + $0x48] sm:$0xff]
      %v1026 = vld [vmem:[%s6 + $0x50] sm:$0xff]
      %v1027 = vld [vmem:[%s6 + $0x58] sm:$0xff]
      %v1028 = vld [vmem:[%s6 + $0x60] sm:$0xff]
      %v1029 = vld [vmem:[%s6 + $0x68] sm:$0xff]
      %v1030 = vld [vmem:[%s6 + $0x70] sm:$0xff]
      %v1031 = vld [vmem:[%s6 + $0x78] sm:$0xff]
      %v1032 = vld [vmem:[%s7] sm:$0x1]
      %v1034 = vlaneseq
      %v1035 = vshrl.u32 %v1034, 7
      %v1036 = vsub.s32 0, %v1035
      %v1037 = vrot.slane %v1032, %v1036
      %1039 = vmatprep.subr.mxu0 0.0
      %1040 = vmatpush1.msra.mxu0 %v1016
      %1041 = vmatprep.subr.mxu0 0.0
      %1042 = vmatpush1.msra.mxu0 %v1017
      %1043 = vmatprep.subr.mxu0 0.0
      %1044 = vmatpush1.msra.mxu0 %v1018
      %1045 = vmatprep.subr.mxu0 0.0
      %1046 = vmatpush1.msra.mxu0 %v1019
      %1047 = vmatprep.subr.mxu0 0.0
      %1048 = vmatpush1.msra.mxu0 %v1020
      %1049 = vmatprep.subr.mxu0 0.0
      %1050 = vmatpush1.msra.mxu0 %v1021
      %1051 = vmatprep.subr.mxu0 0.0
      %1052 = vmatpush1.msra.mxu0 %v1022
      %1053 = vmatprep.subr.mxu0 0.0
      %1054 = vmatpush1.msra.mxu0 %v1023
      %1055 = vmatprep.subr.mxu0 0.0
      %1056 = vmatpush1.msra.mxu0 %v1024
      %1057 = vmatprep.subr.mxu0 0.0
      %1058 = vmatpush1.msra.mxu0 %v1025
      %1059 = vmatprep.subr.mxu0 0.0
      %1060 = vmatpush1.msra.mxu0 %v1026
      %1061 = vmatprep.subr.mxu0 0.0
      %1062 = vmatpush1.msra.mxu0 %v1027
      %1063 = vmatprep.subr.mxu0 0.0
      %1064 = vmatpush1.msra.mxu0 %v1028
      %1065 = vmatprep.subr.mxu0 0.0
      %1066 = vmatpush1.msra.mxu0 %v1029
      %1067 = vmatprep.subr.mxu0 0.0
      %1068 = vmatpush1.msra.mxu0 %v1030
      %1069 = vmatprep.subr.mxu0 0.0
      %1070 = vmatpush1.msra.mxu0 %v1031
      %1071 = vmatprep.subr.mxu0 0.0
      %1072 = vmatpush1.msra.mxu0 0.0
      %1073 = vmatprep.subr.mxu0 0.0
      %1074 = vmatpush1.msra.mxu0 0.0
      %1075 = vmatprep.subr.mxu0 0.0
      %1076 = vmatpush1.msra.mxu0 0.0
      %1077 = vmatprep.subr.mxu0 0.0
      %1078 = vmatpush1.msra.mxu0 0.0
      %1079 = vmatprep.subr.mxu0 0.0
      %1080 = vmatpush1.msra.mxu0 0.0
      %1081 = vmatprep.subr.mxu0 0.0
      %1082 = vmatpush1.msra.mxu0 0.0
      %1083 = vmatprep.subr.mxu0 0.0
      %1084 = vmatpush1.msra.mxu0 0.0
      %1085 = vmatprep.subr.mxu0 0.0
      %1086 = vmatpush1.msra.mxu0 0.0
      %1087 = vmatprep.subr.mxu0 0.0
      %1088 = vmatpush1.msra.mxu0 0.0
      %1089 = vmatprep.subr.mxu0 0.0
      %1090 = vmatpush1.msra.mxu0 0.0
      %1091 = vmatprep.subr.mxu0 0.0
      %1092 = vmatpush1.msra.mxu0 0.0
      %1093 = vmatprep.subr.mxu0 0.0
      %1094 = vmatpush1.msra.mxu0 0.0
      %1095 = vmatprep.subr.mxu0 0.0
      %1096 = vmatpush1.msra.mxu0 0.0
      %1097 = vmatprep.subr.mxu0 0.0
      %1098 = vmatpush1.msra.mxu0 0.0
      %1099 = vmatprep.subr.mxu0 0.0
      %1100 = vmatpush1.msra.mxu0 0.0
      %1101 = vmatprep.subr.mxu0 0.0
      %1102 = vmatpush1.msra.mxu0 0.0
      %1103 = vmatprep.mubr.f32.mxu0 0.0
      %1104 = vmatmul.mubr.f32.gmra.mrb[0].mxu0 %v1000
      %v1105 = vpop.f32.mrb[0].mxu0
      %v1106 = vadd.f32 %v1037, %v1105
      %v1107 = vpop.f32.mrb[0].mxu0
      %1108 = vmatprep.mubr.f32.mxu0 0.0
      %1109 = vmatmul.mubr.f32.gmra.mrb[0].mxu0 %v1001
      %v1110 = vpop.f32.mrb[0].mxu0
      %v1111 = vadd.f32 %v1037, %v1110
      %v1112 = vpop.f32.mrb[0].mxu0
      %1113 = vmatprep.mubr.f32.mxu0 0.0
      %1114 = vmatmul.mubr.f32.gmra.mrb[0].mxu0 %v1002
      %v1115 = vpop.f32.mrb[0].mxu0
      %v1116 = vadd.f32 %v1037, %v1115
      %v1117 = vpop.f32.mrb[0].mxu0
      %1118 = vmatprep.mubr.f32.mxu0 0.0
      %1119 = vmatmul.mubr.f32.gmra.mrb[0].mxu0 %v1003
      %v1120 = vpop.f32.mrb[0].mxu0
      %v1121 = vadd.f32 %v1037, %v1120
      %v1122 = vpop.f32.mrb[0].mxu0
      %1123 = vmatprep.mubr.f32.mxu0 0.0
      %1124 = vmatmul.mubr.f32.gmra.mrb[0].mxu0 %v1004
      %v1125 = vpop.f32.mrb[0].mxu0
      %v1126 = vadd.f32 %v1037, %v1125
      %v1127 = vpop.f32.mrb[0].mxu0
      %1128 = vmatprep.mubr.f32.mxu0 0.0
      %1129 = vmatmul.mubr.f32.gmra.mrb[0].mxu0 %v1005
      %v1130 = vpop.f32.mrb[0].mxu0
      %v1131 = vadd.f32 %v1037, %v1130
      %v1132 = vpop.f32.mrb[0].mxu0
      %1133 = vmatprep.mubr.f32.mxu0 0.0
      %1134 = vmatmul.mubr.f32.gmra.mrb[0].mxu0 %v1006
      %v1135 = vpop.f32.mrb[0].mxu0
      %v1136 = vadd.f32 %v1037, %v1135
      %v1137 = vpop.f32.mrb[0].mxu0
      %1138 = vmatprep.mubr.f32.mxu0 0.0
      %1139 = vmatmul.mubr.f32.gmra.mrb[0].mxu0 %v1007
      %v1140 = vpop.f32.mrb[0].mxu0
      %v1141 = vadd.f32 %v1037, %v1140
      %v1142 = vpop.f32.mrb[0].mxu0
      %1143 = vmatprep.mubr.f32.mxu0 0.0
      %1144 = vmatmul.mubr.f32.gmra.mrb[0].mxu0 %v1008
      %v1145 = vpop.f32.mrb[0].mxu0
      %v1146 = vadd.f32 %v1037, %v1145
      %v1147 = vpop.f32.mrb[0].mxu0
      %1148 = vmatprep.mubr.f32.mxu0 0.0
      %1149 = vmatmul.mubr.f32.gmra.mrb[0].mxu0 %v1009
      %v1150 = vpop.f32.mrb[0].mxu0
      %v1151 = vadd.f32 %v1037, %v1150
      %v1152 = vpop.f32.mrb[0].mxu0
      %1153 = vmatprep.mubr.f32.mxu0 0.0
      %1154 = vmatmul.mubr.f32.gmra.mrb[0].mxu0 %v1010
      %v1155 = vpop.f32.mrb[0].mxu0
      %v1156 = vadd.f32 %v1037, %v1155
      %v1157 = vpop.f32.mrb[0].mxu0
      %1158 = vmatprep.mubr.f32.mxu0 0.0
      %1159 = vmatmul.mubr.f32.gmra.mrb[0].mxu0 %v1011
      %v1160 = vpop.f32.mrb[0].mxu0
      %v1161 = vadd.f32 %v1037, %v1160
      %v1162 = vpop.f32.mrb[0].mxu0
      %1163 = vmatprep.mubr.f32.mxu0 0.0
      %1164 = vmatmul.mubr.f32.gmra.mrb[0].mxu0 %v1012
      %v1165 = vpop.f32.mrb[0].mxu0
      %v1166 = vadd.f32 %v1037, %v1165
      %v1167 = vpop.f32.mrb[0].mxu0
      %1168 = vmatprep.mubr.f32.mxu0 0.0
      %1169 = vmatmul.mubr.f32.gmra.mrb[0].mxu0 %v1013
      %v1170 = vpop.f32.mrb[0].mxu0
      %v1171 = vadd.f32 %v1037, %v1170
      %v1172 = vpop.f32.mrb[0].mxu0
      %1173 = vmatprep.mubr.f32.mxu0 0.0
      %1174 = vmatmul.mubr.f32.gmra.mrb[0].mxu0 %v1014
      %v1175 = vpop.f32.mrb[0].mxu0
      %v1176 = vadd.f32 %v1037, %v1175
      %v1177 = vpop.f32.mrb[0].mxu0
      %1178 = vmatprep.mubr.f32.mxu0 0.0
      %1179 = vmatmul.mubr.f32.gmra.mrb[0].mxu0 %v1015
      %v1180 = vpop.f32.mrb[0].mxu0
      %v1181 = vadd.f32 %v1037, %v1180
      %v1182 = vpop.f32.mrb[0].mxu0
      %1183 = vdwg.mxu0
      %1184 = vst [vmem:[%s325] sm:$0xff] %v1106
      %1185 = vst [vmem:[%s325 + $0x8] sm:$0xff] %v1111
      %1186 = vst [vmem:[%s325 + $0x10] sm:$0xff] %v1116
      %1187 = vst [vmem:[%s325 + $0x18] sm:$0xff] %v1121
      %1188 = vst [vmem:[%s325 + $0x20] sm:$0xff] %v1126
      %1189 = vst [vmem:[%s325 + $0x28] sm:$0xff] %v1131
      %1190 = vst [vmem:[%s325 + $0x30] sm:$0xff] %v1136
      %1191 = vst [vmem:[%s325 + $0x38] sm:$0xff] %v1141
      %1192 = vst [vmem:[%s325 + $0x40] sm:$0xff] %v1146
      %1193 = vst [vmem:[%s325 + $0x48] sm:$0xff] %v1151
      %1194 = vst [vmem:[%s325 + $0x50] sm:$0xff] %v1156
      %1195 = vst [vmem:[%s325 + $0x58] sm:$0xff] %v1161
      %1196 = vst [vmem:[%s325 + $0x60] sm:$0xff] %v1166
      %1197 = vst [vmem:[%s325 + $0x68] sm:$0xff] %v1171
      %1198 = vst [vmem:[%s325 + $0x70] sm:$0xff] %v1176
      %1199 = vst [vmem:[%s325 + $0x78] sm:$0xff] %v1181
      %p1200 = scmp.lt.s32.totalorder %s19, 3
      %s1201 = scalar_select %p1200, %s19, 3
      %s1202 = smul.addr %s1201, 16
      %s1203 = smul.addr %s1202, 8
      %s1204 = scalar_lea.vmem %s8, %s1203
      // Predicated region
      $region53: #{_lambda_.1} parent=51 // pred_check
        %p1205 = pneg %p215
      $region54: #{_lambda_.1} parent=51 // pred_check_branch
        %1207 = sbr.rel (%p1205) target = $region56
      $region55: #{_lambda_.1} parent=51 // pred_region
        _
      $region56: #{_lambda_.1} parent=51 // pred_fallthru
        _
    $region52: #{_lambda_.1} parent=5 // pred_fallthru
      _
    %p1208 = scmp.le.s32.totalorder 2, %s14
    // Predicated region
    $region57: #{_lambda_.1} parent=5 // pred_check
      %p1209 = pneg %p1208
    $region58: #{_lambda_.1} parent=5 // pred_check_branch
      %1211 = sbr.rel (%p1209) target = $region60
    $region59: #{_lambda_.1} parent=5 // pred_region
      %s1212 = ssub.s32 %s14, 2
      // Predicated region
      $region61: #{_lambda_.1} parent=59 // pred_check
        %p1213 = pneg %p221
      $region62: #{_lambda_.1} parent=59 // pred_check_branch
        %1215 = sbr.rel (%p1213) target = $region64
      $region63: #{_lambda_.1} parent=59 // pred_region
        %p1216 = scmp.lt.s32.totalorder %s20, 3
        %s1217 = scalar_select %p1216, %s20, 3
        %s1218 = smul.addr %s1217, 16
        %s1219 = smul.addr %s1218, 8
        %s1220 = scalar_lea.vmem %s8, %s1219
      $region64: #{_lambda_.1} parent=59 // pred_fallthru
        _
    $region60: #{_lambda_.1} parent=5 // pred_fallthru
      _
  $region6: #{_lambda_.1} parent=0 // loop_footer
    %s18 = sadd.s32 1, %s14
  $region7: #{_lambda_.1} parent=0 // loop_footer_branch
    %13 = sbr.rel target = $region3
  $region8: #{_lambda_.1} parent=0 // loop_exit
    _

</llo_original>
